<compile_context>
chip_gen: v7x
topology: tpu7x:2x2x1
jax: 0.10.0
libtpu: 0.0.40
codegen_flags: <defaults>
</compile_context>

<pallas_src>
import jax
import jax.numpy as jnp
from jax.experimental import pallas as pl
from jax.experimental.pallas import tpu as pltpu


# ----------------------------------------------------------------------------
# Primary: zero-traffic aliased identity (no HBM read/write issued by the body)
# ----------------------------------------------------------------------------
def _identity_alias_kernel(x_ref, o_ref):
    del x_ref  # output buffer *is* the input buffer (aliased); nothing to move
    pltpu.touch(o_ref)  # mark output as produced so the call isn't elided


def _alias_identity(x):
    return pl.pallas_call(
        _identity_alias_kernel,
        out_shape=jax.ShapeDtypeStruct(x.shape, x.dtype),
        in_specs=[pl.BlockSpec(memory_space=pl.ANY)],   # raw ref, no auto-DMA
        out_specs=pl.BlockSpec(memory_space=pl.ANY),
        input_output_aliases={0: 0},
        compiler_params=pltpu.CompilerParams(has_side_effects=True),
    )(x)


# ----------------------------------------------------------------------------
# Fallback: lane-dense tiled copy (only used if the aliased path fails to lower)
# ----------------------------------------------------------------------------
def _identity_copy_kernel(x_ref, o_ref):
    o_ref[...] = x_ref[...]


def _lane_dense_view(x):
    """Flatten to a 2-D slab whose last dim is a large multiple of 128 (lane-dense),
    so stores are full-vreg `vst` instead of masked partial stores."""
    total = int(x.size)
    for cols in (4096, 2048, 1024, 512, 256, 128):
        if total % cols == 0:
            return x.reshape(total // cols, cols)
    # Fallback layouts when total isn't a multiple of 128.
    if x.ndim >= 2:
        return x.reshape(total // x.shape[-1], x.shape[-1])
    return x.reshape(1, total)


def _tiled_copy(x):
    orig_shape = x.shape
    x2d = _lane_dense_view(x)
    rows, cols = x2d.shape
    itemsize = jnp.dtype(x.dtype).itemsize

    # Sublane packing: 8 rows/vreg @32-bit, 16 @16-bit, 32 @8-bit dtypes.
    pack = max(1, 4 // max(1, itemsize))
    row_align = 8 * pack

    # Largest row tile (multiple of row_align) whose block stays <= ~4 MiB so that
    # 2 input + 2 output double buffers (~16 MiB) fit v5e/v6e/v7x with the raised
    # scoped VMEM limit below.
    budget_bytes = 4 * 1024 * 1024
    max_tile_rows = max(
        row_align,
        (budget_bytes // max(1, cols * itemsize)) // row_align * row_align,
    )
    tile_rows = rows if rows <= max_tile_rows else max_tile_rows
    grid = (pl.cdiv(rows, tile_rows),)

    out2d = pl.pallas_call(
        _identity_copy_kernel,
        out_shape=jax.ShapeDtypeStruct((rows, cols), x.dtype),
        grid_spec=pltpu.PrefetchScalarGridSpec(
            num_scalar_prefetch=0,
            grid=grid,
            in_specs=[pl.BlockSpec((tile_rows, cols), lambda i: (i, 0))],
            out_specs=pl.BlockSpec((tile_rows, cols), lambda i: (i, 0)),
        ),
        compiler_params=pltpu.CompilerParams(
            dimension_semantics=("parallel",),   # lets v7x's two TCs split the grid
            vmem_limit_bytes=48 * 1024 * 1024,   # > v5e's 16 MiB default, < v7x's 64 MiB physical
        ),
    )(x2d)
    return out2d.reshape(orig_shape)


# ----------------------------------------------------------------------------
# Module forward
# ----------------------------------------------------------------------------
def neural_network_forward(x):
    """Identity forward pass, matching NeuralNetwork.forward(x) -> x."""
    try:
        y = _alias_identity(x)
        return jax.block_until_ready(y)
    except Exception:
        # Robust fallback: optimized lane-dense copy through VMEM.
        return _tiled_copy(x)


if __name__ == "__main__":
    key = jax.random.PRNGKey(0)
    # Small NCHW input consistent with an image-model forward (batch=2, C=4, 16x16 spatial).
    x = jax.random.normal(key, (2, 4, 16, 16), dtype=jnp.float32)

    y = neural_network_forward(x)
    y = jax.block_until_ready(y)

    assert y.shape == x.shape and y.dtype == x.dtype
    assert bool(jnp.array_equal(y, x))
    print("KERNEL_OK")
</pallas_src>

<mosaic_0001>
module attributes {stable_mosaic.version = 11 : i64} {
  func.func @_identity_alias_kernel(%arg0: memref<2x4x16x16xf32, #tpu.memory_space<any>>, %arg1: memref<2x4x16x16xf32, #tpu.memory_space<any>>) attributes {dimension_semantics = [], scalar_prefetch = 0 : i64, scratch_operands = 0 : i64, tpu.core_type = #tpu.core_type<tc>} {
    return
  }
}

module attributes {stable_mosaic.version = 11 : i64} {
  func.func @_identity_copy_kernel(%arg0: i32, %arg1: memref<1x2048xf32, #tpu.memory_space<vmem>>, %arg2: memref<1x2048xf32, #tpu.memory_space<vmem>>) attributes {dimension_semantics = [#tpu.dimension_semantics<parallel>], iteration_bounds = array<i64: 1>, scalar_prefetch = 0 : i64, scratch_operands = 0 : i64, tpu.core_type = #tpu.core_type<tc>, window_params = [{transform_indices = @transform_0, window_bounds = array<i64: 1, 2048>}, {transform_indices = @transform_1, window_bounds = array<i64: 1, 2048>}]} {
    %c0 = arith.constant 0 : index
    %c0_0 = arith.constant 0 : index
    %0 = vector.load %arg1[%c0, %c0_0] : memref<1x2048xf32, #tpu.memory_space<vmem>>, vector<1x2048xf32>
    %c0_1 = arith.constant 0 : index
    %c0_2 = arith.constant 0 : index
    %1 = vector.load %arg2[%c0_1, %c0_2] : memref<1x2048xf32, #tpu.memory_space<vmem>>, vector<1x2048xf32>
    tpu.vector_store %arg2[%c0_1, %c0_2], %0 {strides = array<i32>} : memref<1x2048xf32, #tpu.memory_space<vmem>>, vector<1x2048xf32>,
    return
  }
  func.func @transform_0(%arg0: i32) -> (i32, i32) {
    %c0_i32 = arith.constant 0 : i32
    %c0_i32_0 = arith.constant 0 : i32
    return %arg0, %c0_i32 : i32, i32
  }
  func.func @transform_1(%arg0: i32) -> (i32, i32) {
    %c0_i32 = arith.constant 0 : i32
    %c0_i32_0 = arith.constant 0 : i32
    return %arg0, %c0_i32 : i32, i32
  }
}

</mosaic_0001>

<llo_original>
// kernel: tpu_custom_call.1
$region0: #{tpu_custom_call.1}
  #allocation0 [shape = 'u32[]', space=smem, size = 0x4, offset = 0x4, fixed_abs, tag = 'smem constant byte address 0x4 - core index']
  #allocation1 [shape = 'u32[144,128]{1,0:T(1,128)}', space=vmem, size = 0x12000, scoped, tag = 'internal scratch']
  %s0 = inlined_call_operand.hbm [shape: f32[2,4,16,16], index: 0, kind: input, shape index: {}, may-alias: {0,1}]
  %s1 = inlined_call_operand.hbm [shape: f32[2,4,16,16], index: 1, kind: output, shape index: {}, may-alias: {0,1}]
  %s2 = sld [smem:[#allocation0]]
  $region2: #{tpu_custom_call.1} parent=0
    _
  %s4 = ssub.s32 1, %s2
  %s5 = scalar_select 0, %s4, %s2

// kernel: tpu_custom_call.1
$region0: #{tpu_custom_call.1}
  #allocation0 [shape = 'u32[]', space=smem, size = 0x4, offset = 0x4, fixed_abs, tag = 'smem constant byte address 0x4 - core index']
  #allocation1 [shape = 'u32[144,128]{1,0:T(1,128)}', space=vmem, size = 0x12000, scoped, tag = 'internal scratch']
  %s0 = inlined_call_operand.hbm [shape: f32[1,2048], index: 0, kind: input, shape index: {}]
  %s1 = inlined_call_operand.hbm [shape: f32[1,2048], index: 1, kind: output, shape index: {}]
  %s2 = sld [smem:[#allocation0]]
  $region18: #{tpu_custom_call.1} parent=0
    _
  %s4 = ssub.s32 1, %s2
  %s5 = scalar_select 0, %s4, %s2
  $region1: #{tpu_custom_call.1} parent=0
    #allocation2 [shape = 'u8[8192]{0}', space=vmem, size = 0x2000, scoped, tag = 'input window, operand 0, single buffered']
    #allocation3 [shape = 's32[1]{0}', space=sflag, size = 0x4, scoped, tag = 'scoped memory for tpu_custom_call.1']
    #allocation4 [shape = 's32[1]{0}', space=sflag, size = 0x4, scoped, tag = 'scoped memory for tpu_custom_call.1']
    #allocation5 [shape = 'u8[8192]{0}', space=vmem, size = 0x2000, scoped, tag = 'output window, operand 0, single buffered']
    %6 = vsyncpa [#allocation3], 0
    %7 = vsyncpa [#allocation4], 0
    // Predicated region
    $region2: #{tpu_custom_call.1} parent=1 // pred_check
      _
    $region3: #{tpu_custom_call.1} parent=1 // pred_check_branch
      %9 = sbr.rel (0) target = $region5
    $region4: #{tpu_custom_call.1} parent=1 // pred_region
      %s11 = ssub.s32 256, 256
      %12 = vsyncadd [#allocation3], %s11
      %s14 = sshll.u32 [#allocation2], 4
      %s15 = int_to_ptr.vmem [resolvable:$true] %s14
      %17 = dma.hbm_to_vmem [thread:$0]  %s0, 256, %s15, [#allocation3]
    $region5: #{tpu_custom_call.1} parent=1 // pred_fallthru
      _
    // Predicated region
    $region6: #{tpu_custom_call.1} parent=1 // pred_check
      _
    $region7: #{tpu_custom_call.1} parent=1 // pred_check_branch
      %19 = sbr.rel (0) target = $region9
    $region8: #{tpu_custom_call.1} parent=1 // pred_region
      %20 = dma.done [#allocation3], 256
    $region9: #{tpu_custom_call.1} parent=1 // pred_fallthru
      _
    %v21 = vld [vmem:[#allocation2] sm:$0xff]
    %v22 = vld [vmem:[#allocation2 + $0x8] sm:$0xff]
    %23 = vst [vmem:[#allocation5] sm:$0xff] %v21
    %24 = vst [vmem:[#allocation5 + $0x8] sm:$0xff] %v22
    // Predicated region
    $region10: #{tpu_custom_call.1} parent=1 // pred_check
      _
    $region11: #{tpu_custom_call.1} parent=1 // pred_check_branch
      %26 = sbr.rel (0) target = $region13
    $region12: #{tpu_custom_call.1} parent=1 // pred_region
      %s28 = ssub.s32 256, 256
      %29 = vsyncadd [#allocation4], %s28
      %s31 = sshll.u32 [#allocation5], 4
      %s32 = int_to_ptr.vmem [resolvable:$true] %s31
      %34 = dma.vmem_to_hbm [thread:$0]  %s32, 256, %s1, [#allocation4]
    $region13: #{tpu_custom_call.1} parent=1 // pred_fallthru
      _
    // Predicated region
    $region14: #{tpu_custom_call.1} parent=1 // pred_check
      _
    $region15: #{tpu_custom_call.1} parent=1 // pred_check_branch
      %36 = sbr.rel (0) target = $region17
    $region16: #{tpu_custom_call.1} parent=1 // pred_region
      %37 = dma.done [#allocation4], 256
    $region17: #{tpu_custom_call.1} parent=1 // pred_fallthru
      _
    %38 = vsyncpa [#allocation3], 1
    %39 = vsyncpa [#allocation4], 1

</llo_original>
